<compile_context>
chip_gen: v6e
topology: v6e:2x2x1
jax: 0.10.0
libtpu: 0.0.40
codegen_flags: <defaults>
</compile_context>

<pallas_src>
import math

import jax
import jax.numpy as jnp
from jax.experimental import pallas as pl
from jax.experimental.pallas import tpu as pltpu

_SUBLANE = 8
_LANE = 128
_TARGET_BLOCK_BYTES = 2 * 1024 * 1024   # ~2 MiB per input block (roofline plateau)
_MAX_COL_BLOCK = 2048                   # lane-block fallback for extremely wide rows


def _logistic_kernel(params_ref, x_ref, o_ref):
    # params_ref (SMEM): [a, b, c] — literal reference algebra for f32 parity.
    a = params_ref[0]
    b = params_ref[1]
    c = params_ref[2]
    z = -b * (x_ref[...] - a)                 # VPU: sub + mul
    o_ref[...] = c / (1.0 + jnp.exp(z))       # EUP exp + exact divide (mem-bound: free)


def _choose_blocks(R, C, itemsize):
    """Pick (block_rows, block_cols) for an elementwise kernel on an (R, C) slab."""
    stripe = _SUBLANE * C * itemsize
    if stripe <= _TARGET_BLOCK_BYTES or C % _LANE != 0:
        # Full rows: each block is a fully contiguous HBM range, column axis
        # collapses to a single grid step.
        bc = C
    else:
        bc = _MAX_COL_BLOCK
    rows_fit = max(_SUBLANE, _TARGET_BLOCK_BYTES // max(bc * itemsize, 1))
    br = max(_SUBLANE, (rows_fit // _SUBLANE) * _SUBLANE)
    if br >= R:
        br = R   # full dim is always a legal block shape
    return br, bc


def _as_lane_dense_2d(x):
    """Return (x2d, restore_fn): a lane-dense 2-D view of x and its inverse."""
    shape = x.shape
    total = math.prod(shape) if len(shape) else 1

    # Already a lane-aligned 2-D slab: use as-is (no relayout cost).
    if len(shape) == 2 and shape[1] >= _LANE and shape[1] % _LANE == 0:
        return x, (lambda y: y)

    # N-D with a 128-aligned last dim: collapse leading dims (cheap reshape).
    if len(shape) >= 2 and shape[-1] >= _LANE and shape[-1] % _LANE == 0:
        x2 = x.reshape(total // shape[-1], shape[-1])
        return x2, (lambda y: y.reshape(shape))

    # General fallback: flatten, pad to a multiple of 128 lanes, pick a lane
    # width that keeps at least 8 sublane rows when possible.
    flat = jnp.ravel(x)
    pad = (-total) % _LANE
    if pad:
        flat = jnp.pad(flat, (0, pad))
    padded = total + pad
    cols = _LANE
    for cand in (2048, 1024, 512, 256):
        if padded % cand == 0 and padded // cand >= _SUBLANE:
            cols = cand
            break
    x2 = flat.reshape(padded // cols, cols)

    def restore(y):
        return y.reshape(padded)[:total].reshape(shape)

    return x2, restore


def logistic_growth_forward(x, a, b, c):
    """y = c / (1 + exp(-b * (x - a))) elementwise via a Pallas TPU kernel.

    Shape-agnostic, like the PyTorch module: any float input shape is accepted.
    """
    x = jnp.asarray(x, dtype=jnp.float32)
    x2, restore = _as_lane_dense_2d(x)
    R, C = x2.shape
    itemsize = jnp.dtype(x2.dtype).itemsize
    br, bc = _choose_blocks(R, C, itemsize)
    grid = (pl.cdiv(R, br), pl.cdiv(C, bc))

    params = jnp.stack([jnp.float32(a), jnp.float32(b), jnp.float32(c)])

    y2 = pl.pallas_call(
        _logistic_kernel,
        out_shape=jax.ShapeDtypeStruct((R, C), x2.dtype),
        grid_spec=pltpu.PrefetchScalarGridSpec(
            num_scalar_prefetch=0,
            grid=grid,
            in_specs=[
                pl.BlockSpec(memory_space=pltpu.MemorySpace.SMEM),  # params (3,)
                pl.BlockSpec((br, bc), lambda i, j: (i, j)),        # x tile
            ],
            out_specs=pl.BlockSpec((br, bc), lambda i, j: (i, j)),
        ),
        compiler_params=pltpu.CompilerParams(
            dimension_semantics=("parallel", "parallel"),
        ),
    )(params, x2)

    return restore(y2)


if __name__ == "__main__":
    # Parameters matching the PyTorch module's __init__.
    a, b, c = 20.0, 0.2, 500.0

    def ref(x):
        return c / (1.0 + jnp.exp(-b * (x - a)))

    key = jax.random.PRNGKey(0)
    k1, k2, k3, k4 = jax.random.split(key, 4)

    # 1) Small lane-aligned 2-D input: single-block fast path (grid=(1,1)).
    x1 = jax.random.uniform(k1, (16, 128), dtype=jnp.float32, minval=0.0, maxval=60.0)
    y1 = jax.block_until_ready(logistic_growth_forward(x1, a, b, c))
    assert y1.shape == x1.shape and y1.dtype == x1.dtype
    assert jnp.allclose(y1, ref(x1), rtol=1e-4, atol=1e-2)

    # 2) 4-D input with a narrow last dim: exercises the flatten-to-lane-dense path.
    x2 = jax.random.uniform(k2, (2, 4, 16, 16), dtype=jnp.float32, minval=0.0, maxval=60.0)
    y2 = jax.block_until_ready(logistic_growth_forward(x2, a, b, c))
    assert y2.shape == x2.shape and y2.dtype == x2.dtype
    assert jnp.allclose(y2, ref(x2), rtol=1e-4, atol=1e-2)

    # 3) Odd-sized input (not a multiple of 128): pad + restore path.
    x3 = jax.random.uniform(k3, (7, 13), dtype=jnp.float32, minval=0.0, maxval=60.0)
    y3 = jax.block_until_ready(logistic_growth_forward(x3, a, b, c))
    assert y3.shape == x3.shape and y3.dtype == x3.dtype
    assert jnp.allclose(y3, ref(x3), rtol=1e-4, atol=1e-2)

    # 4) Larger input (4096 x 256 = 4 MiB): tiled multi-step parallel grid with
    #    full-row contiguous 2 MiB blocks.
    x4 = jax.random.uniform(k4, (4096, 256), dtype=jnp.float32, minval=0.0, maxval=60.0)
    y4 = jax.block_until_ready(logistic_growth_forward(x4, a, b, c))
    assert y4.shape == x4.shape and y4.dtype == x4.dtype
    assert jnp.allclose(y4, ref(x4), rtol=1e-4, atol=1e-2)

    print("KERNEL_OK")
</pallas_src>

<mosaic_0001>
module attributes {stable_mosaic.version = 11 : i64} {
  func.func @_logistic_kernel(%arg0: i32, %arg1: i32, %arg2: memref<3xf32, #tpu.memory_space<smem>>, %arg3: memref<16x128xf32, #tpu.memory_space<vmem>>, %arg4: memref<16x128xf32, #tpu.memory_space<vmem>>) attributes {dimension_semantics = [#tpu.dimension_semantics<parallel>, #tpu.dimension_semantics<parallel>], iteration_bounds = array<i64: 1, 1>, scalar_prefetch = 0 : i64, scratch_operands = 0 : i64, tpu.core_type = #tpu.core_type<tc>, window_params = [{transform_indices = @transform_0, window_bounds = array<i64: 3>}, {transform_indices = @transform_1, window_bounds = array<i64: 16, 128>}, {transform_indices = @transform_2, window_bounds = array<i64: 16, 128>}]} {
    %c0 = arith.constant 0 : index
    %0 = memref.load %arg2[%c0] : memref<3xf32, #tpu.memory_space<smem>>
    %c1 = arith.constant 1 : index
    %1 = memref.load %arg2[%c1] : memref<3xf32, #tpu.memory_space<smem>>
    %c2 = arith.constant 2 : index
    %2 = memref.load %arg2[%c2] : memref<3xf32, #tpu.memory_space<smem>>
    %cst = arith.constant 0.000000e+00 : f32
    %3 = arith.subf %cst, %1 : f32
    %c0_0 = arith.constant 0 : index
    %c0_1 = arith.constant 0 : index
    %4 = vector.load %arg3[%c0_0, %c0_1] : memref<16x128xf32, #tpu.memory_space<vmem>>, vector<16x128xf32>
    %5 = vector.broadcast %0 : f32 to vector<16x128xf32>
    %6 = arith.subf %4, %5 : vector<16x128xf32>
    %7 = vector.broadcast %3 : f32 to vector<16x128xf32>
    %8 = arith.mulf %7, %6 : vector<16x128xf32>
    %9 = math.exp %8 : vector<16x128xf32>
    %cst_2 = arith.constant 1.000000e+00 : f32
    %10 = vector.broadcast %cst_2 : f32 to vector<16x128xf32>
    %11 = arith.addf %10, %9 : vector<16x128xf32>
    %12 = vector.broadcast %2 : f32 to vector<16x128xf32>
    %13 = arith.divf %12, %11 : vector<16x128xf32>
    %c0_3 = arith.constant 0 : index
    %c0_4 = arith.constant 0 : index
    %14 = vector.load %arg4[%c0_3, %c0_4] : memref<16x128xf32, #tpu.memory_space<vmem>>, vector<16x128xf32>
    tpu.vector_store %arg4[%c0_3, %c0_4], %13 {strides = array<i32>} : memref<16x128xf32, #tpu.memory_space<vmem>>, vector<16x128xf32>,
    return
  }
  func.func @transform_0(%arg0: i32, %arg1: i32) -> i32 {
    %c0_i32 = arith.constant 0 : i32
    %c0_i32_0 = arith.constant 0 : i32
    return %c0_i32 : i32
  }
  func.func @transform_1(%arg0: i32, %arg1: i32) -> (i32, i32) {
    %c0_i32 = arith.constant 0 : i32
    return %arg0, %arg1 : i32, i32
  }
  func.func @transform_2(%arg0: i32, %arg1: i32) -> (i32, i32) {
    %c0_i32 = arith.constant 0 : i32
    return %arg0, %arg1 : i32, i32
  }
}

</mosaic_0001>

<llo_original>
// kernel: tpu_custom_call.1
$region0: #{tpu_custom_call.1}
  #allocation0 [shape = 'u32[]', space=smem, size = 0x4, offset = 0x4, fixed_abs, tag = 'smem constant byte address 0x4 - core index']
  #allocation1 [shape = 'u32[144,128]{1,0:T(1,128)}', space=vmem, size = 0x12000, scoped, tag = 'internal scratch']
  %s0 = inlined_call_operand.hbm [shape: f32[3], index: 0, kind: input, shape index: {}]
  %s1 = inlined_call_operand.hbm [shape: f32[16,128], index: 1, kind: input, shape index: {}]
  %s2 = inlined_call_operand.hbm [shape: f32[16,128], index: 2, kind: output, shape index: {}]
  %s3 = sld [smem:[#allocation0]]
  $region26: #{tpu_custom_call.1} parent=0
    _
  %s5 = ssub.s32 1, %s3
  %s6 = scalar_select 0, %s5, %s3
  $region1: #{tpu_custom_call.1} parent=0
    #allocation2 [shape = 'u8[512]{0}', space=smem, size = 0x200, scoped, tag = 'input window, operand 0, single buffered']
    #allocation3 [shape = 's32[1]{0}', space=sflag, size = 0x4, scoped, tag = 'scoped memory for tpu_custom_call.1']
    #allocation4 [shape = 's32[1]{0}', space=sflag, size = 0x4, scoped, tag = 'scoped memory for tpu_custom_call.1']
    #allocation5 [shape = 's32[1]{0}', space=sflag, size = 0x4, scoped, tag = 'scoped memory for tpu_custom_call.1']
    #allocation6 [shape = 'u8[8192]{0}', space=vmem, size = 0x2000, scoped, tag = 'input window, operand 1, single buffered']
    #allocation7 [shape = 'u8[8192]{0}', space=vmem, size = 0x2000, scoped, tag = 'output window, operand 0, single buffered']
    %7 = vsyncpa [#allocation5], 0
    %8 = vsyncpa [#allocation3], 0
    %9 = vsyncpa [#allocation4], 0
    // Predicated region
    $region2: #{tpu_custom_call.1} parent=1 // pred_check
      _
    $region3: #{tpu_custom_call.1} parent=1 // pred_check_branch
      %11 = sbr.rel (0) target = $region5
    $region4: #{tpu_custom_call.1} parent=1 // pred_region
      %s13 = ssub.s32 16, 16
      %14 = vsyncadd [#allocation5], %s13
      %17 = dma.hbm_to_smem %s0, 16, [#allocation2], [#allocation5]
    $region5: #{tpu_custom_call.1} parent=1 // pred_fallthru
      _
    // Predicated region
    $region6: #{tpu_custom_call.1} parent=1 // pred_check
      _
    $region7: #{tpu_custom_call.1} parent=1 // pred_check_branch
      %19 = sbr.rel (0) target = $region9
    $region8: #{tpu_custom_call.1} parent=1 // pred_region
      %s21 = ssub.s32 256, 256
      %22 = vsyncadd [#allocation3], %s21
      %s23 = sshll.u32 [#allocation6], 4
      %s24 = int_to_ptr.vmem [resolvable:$true] %s23
      %29 = dma.hbm_to_vmem [thread:$0]  %s1, 256, %s24, [#allocation3], 128, 128, 8
    $region9: #{tpu_custom_call.1} parent=1 // pred_fallthru
      _
    // Predicated region
    $region10: #{tpu_custom_call.1} parent=1 // pred_check
      _
    $region11: #{tpu_custom_call.1} parent=1 // pred_check_branch
      %31 = sbr.rel (0) target = $region13
    $region12: #{tpu_custom_call.1} parent=1 // pred_region
      %32 = dma.done [#allocation5], 16
    $region13: #{tpu_custom_call.1} parent=1 // pred_fallthru
      _
    // Predicated region
    $region14: #{tpu_custom_call.1} parent=1 // pred_check
      _
    $region15: #{tpu_custom_call.1} parent=1 // pred_check_branch
      %34 = sbr.rel (0) target = $region17
    $region16: #{tpu_custom_call.1} parent=1 // pred_region
      %35 = dma.done [#allocation3], 256
    $region17: #{tpu_custom_call.1} parent=1 // pred_fallthru
      _
    %36 = sfence
    %s37 = sld [smem:[#allocation2]]
    %s38 = sld [smem:[#allocation2 + $0x1]]
    %s39 = sld [smem:[#allocation2 + $0x2]]
    %s40 = ssub.f32 0.0, %s38
    %v41 = vld [vmem:[#allocation6] sm:$0xff]
    %v42 = vld [vmem:[#allocation6 + $0x8] sm:$0xff]
    %v43 = vstv %s37
    %v44 = vsub.f32 %v41, %v43
    %v45 = vsub.f32 %v42, %v43
    %v46 = vstv %s40
    %v47 = vmul.f32 %v46, %v44
    %v48 = vmul.f32 %v46, %v45
    %v49 = vmul.f32 %v47, 1.442695
    %v50 = vpow.pop %v49
    %v51 = vmul.f32 %v48, 1.442695
    %v52 = vpow.pop %v51
    %v53 = vadd.f32 %v50, 1.0
    %v54 = vadd.f32 %v52, 1.0
    %v55 = vstv %s39
    %v56 = vrcp.pop %v53
    %v57 = vmul.f32 %v55, %v56
    %v58 = vrcp.pop %v54
    %v59 = vmul.f32 %v55, %v58
    %60 = vst [vmem:[#allocation7] sm:$0xff] %v57
    %61 = vst [vmem:[#allocation7 + $0x8] sm:$0xff] %v59
    // Predicated region
    $region18: #{tpu_custom_call.1} parent=1 // pred_check
      _
    $region19: #{tpu_custom_call.1} parent=1 // pred_check_branch
      %63 = sbr.rel (0) target = $region21
    $region20: #{tpu_custom_call.1} parent=1 // pred_region
      %s65 = ssub.s32 256, 256
      %66 = vsyncadd [#allocation4], %s65
      %s67 = sshll.u32 [#allocation7], 4
      %s68 = int_to_ptr.vmem [resolvable:$true] %s67
      %73 = dma.vmem_to_hbm [thread:$0]  %s68, 256, %s2, [#allocation4], 128, 128, 8
    $region21: #{tpu_custom_call.1} parent=1 // pred_fallthru
      _
    // Predicated region
    $region22: #{tpu_custom_call.1} parent=1 // pred_check
      _
    $region23: #{tpu_custom_call.1} parent=1 // pred_check_branch
      %75 = sbr.rel (0) target = $region25
    $region24: #{tpu_custom_call.1} parent=1 // pred_region
      %76 = dma.done [#allocation4], 256
    $region25: #{tpu_custom_call.1} parent=1 // pred_fallthru
      _
    %77 = vsyncpa [#allocation3], 1
    %78 = vsyncpa [#allocation4], 1
    %79 = vsyncpa [#allocation5], 1

</llo_original>
